<compile_context>
chip_gen: v6e
topology: v6e:2x2x1
jax: 0.10.0
libtpu: 0.0.40
codegen_flags: <defaults>
</compile_context>

<pallas_src>
import jax
import jax.numpy as jnp
from jax.experimental import pallas as pl
from jax.experimental.pallas import tpu as pltpu

LANE = 128           # TPU lane width; batch tiles are multiples of this.
H1, H2 = 64, 32      # hidden widths of the MLP


def mlp_kernel(xT_ref, w1_ref, w2_ref, w3_ref, bias_ref, o_ref):
    # xT_ref:   (F, TILE_B)   bf16   streamed input tile (batch on lanes)
    # w1_ref:   (64, F)       bf16   VMEM-resident
    # w2_ref:   (32, 64)      bf16   VMEM-resident
    # w3_ref:   (1, 32)       bf16   VMEM-resident
    # bias_ref: (104, 1)      f32    rows 0-63 = b1, 64-95 = b2, 96 = b3
    # o_ref:    (1, TILE_B)   f32    lane-dense output tile
    xT = xT_ref[...]

    b1 = bias_ref[0:H1, :]                      # (64, 1)
    b2 = bias_ref[H1:H1 + H2, :]                # (32, 1)
    b3 = bias_ref[H1 + H2:H1 + H2 + 1, :]       # (1, 1)

    # Layer 1: (64, F) @ (F, TILE_B) -> (64, TILE_B), f32 accumulate on MXU.
    h1 = jnp.dot(w1_ref[...], xT, preferred_element_type=jnp.float32)
    h1 = jnp.maximum(h1 + b1, 0.0)

    # Layer 2: (32, 64) @ (64, TILE_B) -> (32, TILE_B).
    h2 = jnp.dot(w2_ref[...], h1.astype(jnp.bfloat16),
                 preferred_element_type=jnp.float32)
    h2 = jnp.maximum(h2 + b2, 0.0)

    # Layer 3: (1, 32) @ (32, TILE_B) -> (1, TILE_B); already lane-dense.
    y = jnp.dot(w3_ref[...], h2.astype(jnp.bfloat16),
                preferred_element_type=jnp.float32)
    o_ref[...] = (y + b3).astype(o_ref.dtype)


def mlp_forward(x, packed_params, *, tile_b=8192,
                vmem_limit_bytes=32 * 1024 * 1024):
    """x: (B, F) f32.  packed_params from pack_params().  Returns (B, 1) f32."""
    w1, w2, w3, bias = packed_params
    B, F = x.shape

    # Batch lives on the lane axis: stream x as (F, B) in bf16 (one cheap
    # transpose + cast in the wrapper, F is tiny).
    xT = x.T.astype(jnp.bfloat16)

    # Per-batch-row VMEM estimate (bytes): double-buffered bf16 x column,
    # f32 h1^T/h2^T plus their bf16 copies, double-buffered (8-sublane padded)
    # f32 output column.  Spend at most half the scoped limit on tile data.
    per_row = 2 * (F * 2) + H1 * (4 + 2) + H2 * (4 + 2) + 2 * (8 * 4)
    budget_cap = max(LANE, ((vmem_limit_bytes // 2) // per_row) // LANE * LANE)

    # Lane-dense tiles (>=128 rows), budget-capped, and never pad a small
    # batch past a single tile.
    tile_b = max(LANE, min(tile_b, budget_cap, pl.cdiv(B, LANE) * LANE))
    num_tiles = pl.cdiv(B, tile_b)
    b_padded = num_tiles * tile_b
    if b_padded != B:
        xT = jnp.pad(xT, ((0, 0), (0, b_padded - B)))

    out_row = pl.pallas_call(
        mlp_kernel,
        out_shape=jax.ShapeDtypeStruct((1, b_padded), jnp.float32),
        grid=(num_tiles,),
        in_specs=[
            pl.BlockSpec((F, tile_b), lambda i: (0, i)),     # streamed x^T tile
            pl.BlockSpec(w1.shape, lambda i: (0, 0)),        # resident
            pl.BlockSpec(w2.shape, lambda i: (0, 0)),        # resident
            pl.BlockSpec(w3.shape, lambda i: (0, 0)),        # resident
            pl.BlockSpec(bias.shape, lambda i: (0, 0)),      # resident
        ],
        out_specs=pl.BlockSpec((1, tile_b), lambda i: (0, i)),  # lane-dense
        compiler_params=pltpu.CompilerParams(
            dimension_semantics=("parallel",),
            vmem_limit_bytes=vmem_limit_bytes),
    )(xT, w1, w2, w3, bias)

    return out_row[0, :B].reshape(B, 1)


def init_params(key, input_size):
    # PyTorch nn.Linear layout: W (out, in), b (out,), U(-1/sqrt(fan_in), +).
    ks = jax.random.split(key, 6)

    def linear(kw, kb, fan_in, fan_out):
        bound = 1.0 / jnp.sqrt(jnp.float32(fan_in))
        w = jax.random.uniform(kw, (fan_out, fan_in), jnp.float32, -bound, bound)
        b = jax.random.uniform(kb, (fan_out,), jnp.float32, -bound, bound)
        return w, b

    w1, b1 = linear(ks[0], ks[1], input_size, H1)
    w2, b2 = linear(ks[2], ks[3], H1, H2)
    w3, b3 = linear(ks[4], ks[5], H2, 1)
    return (w1, b1, w2, b2, w3, b3)


def pack_params(params):
    """Weights stay in PyTorch's (out, in) layout (already correct for the
    batch-on-lanes formulation), cast to bf16; biases packed into a single
    (104, 1) f32 column at sublane-aligned offsets."""
    w1, b1, w2, b2, w3, b3 = params
    bias = jnp.zeros((104, 1), jnp.float32)
    bias = bias.at[0:H1, 0].set(b1)
    bias = bias.at[H1:H1 + H2, 0].set(b2)
    bias = bias.at[H1 + H2, 0].set(b3[0])
    return (w1.astype(jnp.bfloat16), w2.astype(jnp.bfloat16),
            w3.astype(jnp.bfloat16), bias)


def mlp_reference(x, params):
    w1, b1, w2, b2, w3, b3 = params
    h = jnp.maximum(x @ w1.T + b1, 0.0)
    h = jnp.maximum(h @ w2.T + b2, 0.0)
    return h @ w3.T + b3


if __name__ == "__main__":
    input_size = 16   # stand-in for len(features) in the original script
    batch = 8

    key = jax.random.PRNGKey(0)
    kx, kp = jax.random.split(key)

    x = jax.random.normal(kx, (batch, input_size), jnp.float32)
    params = init_params(kp, input_size)
    packed = pack_params(params)

    out = jax.block_until_ready(mlp_forward(x, packed))
    ref = mlp_reference(x, params)
    assert out.shape == (batch, 1)
    # bf16 operands (f32 accumulation) vs. pure-f32 reference -> relaxed tol.
    assert jnp.allclose(out, ref, atol=3e-2, rtol=3e-2)

    # Also exercise the multi-tile / padded-batch pipeline path.
    x2 = jax.random.normal(kx, (300, input_size), jnp.float32)
    out2 = jax.block_until_ready(mlp_forward(x2, packed, tile_b=128))
    ref2 = mlp_reference(x2, params)
    assert out2.shape == (300, 1)
    assert jnp.allclose(out2, ref2, atol=3e-2, rtol=3e-2)

    print("KERNEL_OK")
</pallas_src>

<mosaic_0001>
module attributes {stable_mosaic.version = 11 : i64} {
  func.func @mlp_kernel(%arg0: i32, %arg1: memref<16x128xbf16, #tpu.memory_space<vmem>>, %arg2: memref<64x16xbf16, #tpu.memory_space<vmem>>, %arg3: memref<32x64xbf16, #tpu.memory_space<vmem>>, %arg4: memref<1x32xbf16, #tpu.memory_space<vmem>>, %arg5: memref<104x1xf32, #tpu.memory_space<vmem>>, %arg6: memref<1x128xf32, #tpu.memory_space<vmem>>) attributes {dimension_semantics = [#tpu.dimension_semantics<parallel>], iteration_bounds = array<i64: 1>, scalar_prefetch = 0 : i64, scratch_operands = 0 : i64, tpu.core_type = #tpu.core_type<tc>, window_params = [{transform_indices = @transform_0, window_bounds = array<i64: 16, 128>}, {pipeline_mode = #tpu.pipeline_mode<synchronous>, transform_indices = @transform_1, window_bounds = array<i64: 64, 16>}, {pipeline_mode = #tpu.pipeline_mode<synchronous>, transform_indices = @transform_2, window_bounds = array<i64: 32, 64>}, {pipeline_mode = #tpu.pipeline_mode<synchronous>, transform_indices = @transform_3, window_bounds = array<i64: 1, 32>}, {pipeline_mode = #tpu.pipeline_mode<synchronous>, transform_indices = @transform_4, window_bounds = array<i64: 104, 1>}, {transform_indices = @transform_5, window_bounds = array<i64: 1, 128>}]} {
    %c0 = arith.constant 0 : index
    %c0_0 = arith.constant 0 : index
    %0 = vector.load %arg1[%c0, %c0_0] : memref<16x128xbf16, #tpu.memory_space<vmem>>, vector<16x128xbf16>
    %c0_1 = arith.constant 0 : index
    %c0_2 = arith.constant 0 : index
    %1 = vector.load %arg5[%c0_1, %c0_2] : memref<104x1xf32, #tpu.memory_space<vmem>>, vector<64x1xf32>
    %c64 = arith.constant 64 : index
    %c0_3 = arith.constant 0 : index
    %2 = vector.load %arg5[%c64, %c0_3] : memref<104x1xf32, #tpu.memory_space<vmem>>, vector<32x1xf32>
    %c96 = arith.constant 96 : index
    %c0_4 = arith.constant 0 : index
    %3 = vector.load %arg5[%c96, %c0_4] : memref<104x1xf32, #tpu.memory_space<vmem>>, vector<1x1xf32>
    %c0_5 = arith.constant 0 : index
    %c0_6 = arith.constant 0 : index
    %4 = vector.load %arg2[%c0_5, %c0_6] : memref<64x16xbf16, #tpu.memory_space<vmem>>, vector<64x16xbf16>
    %cst = arith.constant dense<0.000000e+00> : vector<64x128xf32>
    %5 = tpu.matmul %4, %0, %cst {dimension_numbers = #tpu.dot_dimension_numbers<[1], [0], [0], [1], [0, 0, 1, 1], [], []>} : vector<64x16xbf16>, vector<16x128xbf16>, vector<64x128xf32> -> vector<64x128xf32>
    %6 = vector.broadcast %1 : vector<64x1xf32> to vector<64x128xf32>
    %7 = arith.addf %5, %6 : vector<64x128xf32>
    %cst_7 = arith.constant 0.000000e+00 : f32
    %8 = vector.broadcast %cst_7 : f32 to vector<64x128xf32>
    %9 = arith.maximumf %7, %8 : vector<64x128xf32>
    %c0_8 = arith.constant 0 : index
    %c0_9 = arith.constant 0 : index
    %10 = vector.load %arg3[%c0_8, %c0_9] : memref<32x64xbf16, #tpu.memory_space<vmem>>, vector<32x64xbf16>
    %11 = arith.truncf %9 : vector<64x128xf32> to vector<64x128xbf16>
    %cst_10 = arith.constant dense<0.000000e+00> : vector<32x128xf32>
    %12 = tpu.matmul %10, %11, %cst_10 {dimension_numbers = #tpu.dot_dimension_numbers<[1], [0], [0], [1], [0, 0, 1, 1], [], []>} : vector<32x64xbf16>, vector<64x128xbf16>, vector<32x128xf32> -> vector<32x128xf32>
    %13 = vector.broadcast %2 : vector<32x1xf32> to vector<32x128xf32>
    %14 = arith.addf %12, %13 : vector<32x128xf32>
    %cst_11 = arith.constant 0.000000e+00 : f32
    %15 = vector.broadcast %cst_11 : f32 to vector<32x128xf32>
    %16 = arith.maximumf %14, %15 : vector<32x128xf32>
    %c0_12 = arith.constant 0 : index
    %c0_13 = arith.constant 0 : index
    %17 = vector.load %arg4[%c0_12, %c0_13] : memref<1x32xbf16, #tpu.memory_space<vmem>>, vector<1x32xbf16>
    %18 = arith.truncf %16 : vector<32x128xf32> to vector<32x128xbf16>
    %cst_14 = arith.constant dense<0.000000e+00> : vector<1x128xf32>
    %19 = tpu.matmul %17, %18, %cst_14 {dimension_numbers = #tpu.dot_dimension_numbers<[1], [0], [0], [1], [0, 0, 1, 1], [], []>} : vector<1x32xbf16>, vector<32x128xbf16>, vector<1x128xf32> -> vector<1x128xf32>
    %20 = vector.broadcast %3 : vector<1x1xf32> to vector<1x128xf32>
    %21 = arith.addf %19, %20 : vector<1x128xf32>
    %c0_15 = arith.constant 0 : index
    %c0_16 = arith.constant 0 : index
    %22 = vector.load %arg6[%c0_15, %c0_16] : memref<1x128xf32, #tpu.memory_space<vmem>>, vector<1x128xf32>
    tpu.vector_store %arg6[%c0_15, %c0_16], %21 {strides = array<i32>} : memref<1x128xf32, #tpu.memory_space<vmem>>, vector<1x128xf32>,
    return
  }
  func.func @transform_0(%arg0: i32) -> (i32, i32) {
    %c0_i32 = arith.constant 0 : i32
    %c0_i32_0 = arith.constant 0 : i32
    return %c0_i32, %arg0 : i32, i32
  }
  func.func @transform_1(%arg0: i32) -> (i32, i32) {
    %c0_i32 = arith.constant 0 : i32
    %c0_i32_0 = arith.constant 0 : i32
    %c0_i32_1 = arith.constant 0 : i32
    return %c0_i32, %c0_i32_0 : i32, i32
  }
  func.func @transform_2(%arg0: i32) -> (i32, i32) {
    %c0_i32 = arith.constant 0 : i32
    %c0_i32_0 = arith.constant 0 : i32
    %c0_i32_1 = arith.constant 0 : i32
    return %c0_i32, %c0_i32_0 : i32, i32
  }
  func.func @transform_3(%arg0: i32) -> (i32, i32) {
    %c0_i32 = arith.constant 0 : i32
    %c0_i32_0 = arith.constant 0 : i32
    %c0_i32_1 = arith.constant 0 : i32
    return %c0_i32, %c0_i32_0 : i32, i32
  }
  func.func @transform_4(%arg0: i32) -> (i32, i32) {
    %c0_i32 = arith.constant 0 : i32
    %c0_i32_0 = arith.constant 0 : i32
    %c0_i32_1 = arith.constant 0 : i32
    return %c0_i32, %c0_i32_0 : i32, i32
  }
  func.func @transform_5(%arg0: i32) -> (i32, i32) {
    %c0_i32 = arith.constant 0 : i32
    %c0_i32_0 = arith.constant 0 : i32
    return %c0_i32, %arg0 : i32, i32
  }
}

</mosaic_0001>

<llo_original>
// kernel: tpu_custom_call.1
$region0: #{tpu_custom_call.1}
  #allocation0 [shape = 'u32[]', space=smem, size = 0x4, offset = 0x4, fixed_abs, tag = 'smem constant byte address 0x4 - core index']
  #allocation1 [shape = 'u32[144,128]{1,0:T(1,128)}', space=vmem, size = 0x12000, scoped, tag = 'internal scratch']
  %s0 = inlined_call_operand.vmem [shape: bf16[16,128], index: 0, kind: input, shape index: {}]
  %s1 = inlined_call_operand.vmem [shape: bf16[64,16], index: 1, kind: input, shape index: {}]
  %s2 = inlined_call_operand.vmem [shape: bf16[32,64], index: 2, kind: input, shape index: {}]
  %s3 = inlined_call_operand.vmem [shape: bf16[1,32], index: 3, kind: input, shape index: {}]
  %s4 = inlined_call_operand.vmem [shape: f32[104,1], index: 4, kind: input, shape index: {}]
  %s5 = inlined_call_operand.hbm [shape: f32[1,128], index: 5, kind: output, shape index: {}]
  %s6 = sld [smem:[#allocation0]]
  $region30: #{tpu_custom_call.1} parent=0
    _
  %s8 = ssub.s32 1, %s6
  %s9 = scalar_select 0, %s8, %s6
  $region1: #{tpu_custom_call.1} parent=0
    #allocation2 [shape = 'u8[512]{0}', space=vmem, size = 0x400, scoped, tag = 'output window, operand 0, single buffered']
    #allocation3 [shape = 's32[1]{0}', space=sflag, size = 0x4, scoped, tag = 'scoped memory for tpu_custom_call.1']
    %10 = vsyncpa [#allocation3], 0
    // Predicated region
    $region2: #{tpu_custom_call.1} parent=1 // pred_check
      _
    $region3: #{tpu_custom_call.1} parent=1 // pred_check_branch
      %12 = sbr.rel (0) target = $region5
    $region4: #{tpu_custom_call.1} parent=1 // pred_region
      _
    $region5: #{tpu_custom_call.1} parent=1 // pred_fallthru
      _
    // Predicated region
    $region6: #{tpu_custom_call.1} parent=1 // pred_check
      _
    $region7: #{tpu_custom_call.1} parent=1 // pred_check_branch
      %14 = sbr.rel (0) target = $region9
    $region8: #{tpu_custom_call.1} parent=1 // pred_region
      _
    $region9: #{tpu_custom_call.1} parent=1 // pred_fallthru
      _
    // Predicated region
    $region10: #{tpu_custom_call.1} parent=1 // pred_check
      _
    $region11: #{tpu_custom_call.1} parent=1 // pred_check_branch
      %16 = sbr.rel (0) target = $region13
    $region12: #{tpu_custom_call.1} parent=1 // pred_region
      _
    $region13: #{tpu_custom_call.1} parent=1 // pred_fallthru
      _
    // Predicated region
    $region14: #{tpu_custom_call.1} parent=1 // pred_check
      _
    $region15: #{tpu_custom_call.1} parent=1 // pred_check_branch
      %18 = sbr.rel (0) target = $region17
    $region16: #{tpu_custom_call.1} parent=1 // pred_region
      _
    $region17: #{tpu_custom_call.1} parent=1 // pred_fallthru
      _
    // Predicated region
    $region18: #{tpu_custom_call.1} parent=1 // pred_check
      _
    $region19: #{tpu_custom_call.1} parent=1 // pred_check_branch
      %20 = sbr.rel (0) target = $region21
    $region20: #{tpu_custom_call.1} parent=1 // pred_region
      _
    $region21: #{tpu_custom_call.1} parent=1 // pred_fallthru
      _
    %v22 = vld [vmem:[%s0] sm:$0xf]
    %v23 = vld [vmem:[%s0 + $0x4] sm:$0xf]
    %v24 = vld [vmem:[%s4] sm:$0xff]
    %v25 = vld [vmem:[%s4 + $0x8] sm:$0xff]
    %v26 = vld [vmem:[%s4 + $0x10] sm:$0xff]
    %v27 = vld [vmem:[%s4 + $0x18] sm:$0xff]
    %v28 = vld [vmem:[%s4 + $0x20] sm:$0xff]
    %v29 = vld [vmem:[%s4 + $0x28] sm:$0xff]
    %v30 = vld [vmem:[%s4 + $0x30] sm:$0xff]
    %v31 = vld [vmem:[%s4 + $0x38] sm:$0xff]
    %v32 = vld [vmem:[%s4 + $0x40] sm:$0xff]
    %v33 = vld [vmem:[%s4 + $0x48] sm:$0xff]
    %v34 = vld [vmem:[%s4 + $0x50] sm:$0xff]
    %v35 = vld [vmem:[%s4 + $0x58] sm:$0xff]
    %v36 = vld [vmem:[%s4 + $0x60] sm:$0x1]
    %v37 = vld [vmem:[%s1] sm:$0xf]
    %v38 = vld [vmem:[%s1 + $0x4] sm:$0xf]
    %v39 = vld [vmem:[%s1 + $0x8] sm:$0xf]
    %v40 = vld [vmem:[%s1 + $0xc] sm:$0xf]
    %v41 = vld [vmem:[%s1 + $0x10] sm:$0xf]
    %v42 = vld [vmem:[%s1 + $0x14] sm:$0xf]
    %v43 = vld [vmem:[%s1 + $0x18] sm:$0xf]
    %v44 = vld [vmem:[%s1 + $0x1c] sm:$0xf]
    %46 = vset.pattern.permute.xlu0 0
    %47 = vperm.xlu0 %46, %v24
    %v48 = vpop.permute.xlu0 %47
    %51 = vset.pattern.permute.xlu0 0
    %52 = vperm.xlu0 %51, %v25
    %v53 = vpop.permute.xlu0 %52
    %56 = vset.pattern.permute.xlu0 0
    %57 = vperm.xlu0 %56, %v26
    %v58 = vpop.permute.xlu0 %57
    %61 = vset.pattern.permute.xlu0 0
    %62 = vperm.xlu0 %61, %v27
    %v63 = vpop.permute.xlu0 %62
    %66 = vset.pattern.permute.xlu0 0
    %67 = vperm.xlu0 %66, %v28
    %v68 = vpop.permute.xlu0 %67
    %71 = vset.pattern.permute.xlu0 0
    %72 = vperm.xlu0 %71, %v29
    %v73 = vpop.permute.xlu0 %72
    %76 = vset.pattern.permute.xlu0 0
    %77 = vperm.xlu0 %76, %v30
    %v78 = vpop.permute.xlu0 %77
    %81 = vset.pattern.permute.xlu0 0
    %82 = vperm.xlu0 %81, %v31
    %v83 = vpop.permute.xlu0 %82
    %v93 = vunpack.c.l.b16 %v37
    %v94 = vunpack.c.l.b16 %v38
    %v95 = vunpack.c.l.b16 %v39
    %v96 = vunpack.c.l.b16 %v40
    %v97 = vunpack.c.l.b16 %v41
    %v98 = vunpack.c.l.b16 %v42
    %v99 = vunpack.c.l.b16 %v43
    %v100 = vunpack.c.l.b16 %v44
    %v101 = vpack.c.b16 %v94, %v93
    %v102 = vpack.c.b16 %v96, %v95
    %v103 = vpack.c.b16 %v98, %v97
    %v104 = vpack.c.b16 %v100, %v99
    %v107 = vunpack.c.l.b16 %v22
    %v108 = vunpack.c.l.b16 %v23
    %v109 = vpack.c.b16 %v108, %v107
    %vm111 = vcmask 130048
    %v113 = vsel %vm111, %v101, 0
    %v116 = vsel %vm111, %v102, 0
    %v119 = vsel %vm111, %v103, 0
    %v122 = vsel %vm111, %v104, 0
    %124 = vmatprep.subr.bf16.mxu0 0
    %125 = vmatpush1.bf16.msra.mxu0 0
    %126 = vmatprep.subr.bf16.mxu0 0
    %127 = vmatpush1.bf16.msra.mxu0 0
    %128 = vmatprep.subr.bf16.mxu0 0
    %129 = vmatpush1.bf16.msra.mxu0 0
    %130 = vmatprep.subr.bf16.mxu0 0
    %131 = vmatpush1.bf16.msra.mxu0 0
    %132 = vmatprep.subr.bf16.mxu0 0
    %133 = vmatpush1.bf16.msra.mxu0 0
    %134 = vmatprep.subr.bf16.mxu0 0
    %135 = vmatpush1.bf16.msra.mxu0 0
    %136 = vmatprep.subr.bf16.mxu0 0
    %137 = vmatpush1.bf16.msra.mxu0 0
    %138 = vmatprep.subr.bf16.mxu0 0
    %139 = vmatpush1.bf16.msra.mxu0 %v109
    %140 = vmatprep.subr.bf16.mxu0 0
    %141 = vmatpush2.bf16.msra.mxu0 0
    %142 = vmatprep.subr.bf16.mxu0 0
    %143 = vmatpush2.bf16.msra.mxu0 0
    %144 = vmatprep.subr.bf16.mxu0 0
    %145 = vmatpush2.bf16.msra.mxu0 0
    %146 = vmatprep.subr.bf16.mxu0 0
    %147 = vmatpush2.bf16.msra.mxu0 0
    %148 = vmatprep.subr.bf16.mxu0 0
    %149 = vmatpush2.bf16.msra.mxu0 0
    %150 = vmatprep.subr.bf16.mxu0 0
    %151 = vmatpush2.bf16.msra.mxu0 0
    %152 = vmatprep.subr.bf16.mxu0 0
    %153 = vmatpush2.bf16.msra.mxu0 0
    %154 = vmatprep.subr.bf16.mxu0 0
    %155 = vmatpush2.bf16.msra.mxu0 0
    %156 = vmatprep.mubr.bf16.mxu0 0
    %157 = vmatmul.mubr.bf16.gmra.mxu0 %v113
    %v158 = vpop.f32.mrf.mxu0
    %v159 = vadd.f32 %v48, %v158
    %v160 = vpop.f32.mrf.mxu0
    %v161 = vpop.f32.mrf.mxu0
    %v162 = vadd.f32 %v53, %v161
    %v163 = vpop.f32.mrf.mxu0
    %164 = vmatprep.mubr.bf16.mxu0 0
    %165 = vmatmul.mubr.bf16.gmra.mxu0 %v116
    %v166 = vpop.f32.mrf.mxu0
    %v167 = vadd.f32 %v58, %v166
    %v168 = vpop.f32.mrf.mxu0
    %v169 = vpop.f32.mrf.mxu0
    %v170 = vadd.f32 %v63, %v169
    %v171 = vpop.f32.mrf.mxu0
    %172 = vmatprep.mubr.bf16.mxu0 0
    %173 = vmatmul.mubr.bf16.gmra.mxu0 %v119
    %v174 = vpop.f32.mrf.mxu0
    %v175 = vadd.f32 %v68, %v174
    %v176 = vpop.f32.mrf.mxu0
    %v177 = vpop.f32.mrf.mxu0
    %v178 = vadd.f32 %v73, %v177
    %v179 = vpop.f32.mrf.mxu0
    %180 = vmatprep.mubr.bf16.mxu0 0
    %181 = vmatmul.mubr.bf16.gmra.mxu0 %v122
    %v182 = vpop.f32.mrf.mxu0
    %v183 = vadd.f32 %v78, %v182
    %v184 = vpop.f32.mrf.mxu0
    %v185 = vpop.f32.mrf.mxu0
    %v186 = vadd.f32 %v83, %v185
    %v187 = vpop.f32.mrf.mxu0
    %188 = vdwg.mxu0
    %v189 = vmax.f32 %v159, 0.0
    %v190 = vmax.f32 %v162, 0.0
    %v191 = vmax.f32 %v167, 0.0
    %v192 = vmax.f32 %v170, 0.0
    %v193 = vmax.f32 %v175, 0.0
    %v194 = vmax.f32 %v178, 0.0
    %v195 = vmax.f32 %v183, 0.0
    %v196 = vmax.f32 %v186, 0.0
    %v197 = vld [vmem:[%s2] sm:$0xf]
    %v198 = vld [vmem:[%s2 + $0x4] sm:$0xf]
    %v199 = vld [vmem:[%s2 + $0x8] sm:$0xf]
    %v200 = vld [vmem:[%s2 + $0xc] sm:$0xf]
    %v201 = vpack.c.bf16 %v190, %v189
    %v202 = vpack.c.bf16 %v192, %v191
    %v203 = vpack.c.bf16 %v194, %v193
    %v204 = vpack.c.bf16 %v196, %v195
    %206 = vset.pattern.permute.xlu0 0
    %207 = vperm.xlu0 %206, %v32
    %v208 = vpop.permute.xlu0 %207
    %211 = vset.pattern.permute.xlu0 0
    %212 = vperm.xlu0 %211, %v33
    %v213 = vpop.permute.xlu0 %212
    %216 = vset.pattern.permute.xlu0 0
    %217 = vperm.xlu0 %216, %v34
    %v218 = vpop.permute.xlu0 %217
    %221 = vset.pattern.permute.xlu0 0
    %222 = vperm.xlu0 %221, %v35
    %v223 = vpop.permute.xlu0 %222
    %v229 = vunpack.c.l.b16 %v197
    %v230 = vunpack.c.l.b16 %v198
    %v231 = vunpack.c.l.b16 %v199
    %v232 = vunpack.c.l.b16 %v200
    %v233 = vpack.c.b16 %v230, %v229
    %v234 = vpack.c.b16 %v232, %v231
    %vm235 = vcmask 523264
    %v237 = vsel %vm235, %v233, 0
    %v240 = vsel %vm235, %v234, 0
    %242 = vmatprep.subr.bf16.mxu0 0
    %243 = vmatpush1.bf16.msra.mxu0 0
    %244 = vmatprep.subr.bf16.mxu0 0
    %245 = vmatpush1.bf16.msra.mxu0 0
    %246 = vmatprep.subr.bf16.mxu0 0
    %247 = vmatpush1.bf16.msra.mxu0 0
    %248 = vmatprep.subr.bf16.mxu0 0
    %249 = vmatpush1.bf16.msra.mxu0 0
    %250 = vmatprep.subr.bf16.mxu0 0
    %251 = vmatpush1.bf16.msra.mxu0 %v204
    %252 = vmatprep.subr.bf16.mxu0 0
    %253 = vmatpush1.bf16.msra.mxu0 %v203
    %254 = vmatprep.subr.bf16.mxu0 0
    %255 = vmatpush1.bf16.msra.mxu0 %v202
    %256 = vmatprep.subr.bf16.mxu0 0
    %257 = vmatpush1.bf16.msra.mxu0 %v201
    %258 = vmatprep.subr.bf16.mxu0 0
    %259 = vmatpush2.bf16.msra.mxu0 0
    %260 = vmatprep.subr.bf16.mxu0 0
    %261 = vmatpush2.bf16.msra.mxu0 0
    %262 = vmatprep.subr.bf16.mxu0 0
    %263 = vmatpush2.bf16.msra.mxu0 0
    %264 = vmatprep.subr.bf16.mxu0 0
    %265 = vmatpush2.bf16.msra.mxu0 0
    %266 = vmatprep.subr.bf16.mxu0 0
    %267 = vmatpush2.bf16.msra.mxu0 0
    %268 = vmatprep.subr.bf16.mxu0 0
    %269 = vmatpush2.bf16.msra.mxu0 0
    %270 = vmatprep.subr.bf16.mxu0 0
    %271 = vmatpush2.bf16.msra.mxu0 0
    %272 = vmatprep.subr.bf16.mxu0 0
    %273 = vmatpush2.bf16.msra.mxu0 0
    %274 = vmatprep.mubr.bf16.mxu0 0
    %275 = vmatmul.mubr.bf16.gmra.mxu0 %v237
    %v276 = vpop.f32.mrf.mxu0
    %v277 = vadd.f32 %v208, %v276
    %v278 = vpop.f32.mrf.mxu0
    %v279 = vpop.f32.mrf.mxu0
    %v280 = vadd.f32 %v213, %v279
    %v281 = vpop.f32.mrf.mxu0
    %282 = vmatprep.mubr.bf16.mxu0 0
    %283 = vmatmul.mubr.bf16.gmra.mxu0 %v240
    %v284 = vpop.f32.mrf.mxu0
    %v285 = vadd.f32 %v218, %v284
    %v286 = vpop.f32.mrf.mxu0
    %v287 = vpop.f32.mrf.mxu0
    %v288 = vadd.f32 %v223, %v287
    %v289 = vpop.f32.mrf.mxu0
    %290 = vdwg.mxu0
    %v291 = vmax.f32 %v277, 0.0
    %v292 = vmax.f32 %v280, 0.0
    %v293 = vmax.f32 %v285, 0.0
    %v294 = vmax.f32 %v288, 0.0
    %v295 = vld [vmem:[%s3] sm:$0x1]
    %v296 = vpack.c.bf16 %v292, %v291
    %v297 = vpack.c.bf16 %v294, %v293
    %299 = vset.pattern.permute.xlu0 0
    %300 = vperm.xlu0 %299, %v36
    %v301 = vpop.permute.xlu0 %300
    %vm303 = vcmask 261120
    %v305 = vsel %vm303, %v295, 0
    %307 = vmatprep.subr.bf16.mxu0 0
    %308 = vmatpush1.bf16.msra.mxu0 0
    %309 = vmatprep.subr.bf16.mxu0 0
    %310 = vmatpush1.bf16.msra.mxu0 0
    %311 = vmatprep.subr.bf16.mxu0 0
    %312 = vmatpush1.bf16.msra.mxu0 0
    %313 = vmatprep.subr.bf16.mxu0 0
    %314 = vmatpush1.bf16.msra.mxu0 0
    %315 = vmatprep.subr.bf16.mxu0 0
    %316 = vmatpush1.bf16.msra.mxu0 0
    %317 = vmatprep.subr.bf16.mxu0 0
    %318 = vmatpush1.bf16.msra.mxu0 0
    %319 = vmatprep.subr.bf16.mxu0 0
    %320 = vmatpush1.bf16.msra.mxu0 %v297
    %321 = vmatprep.subr.bf16.mxu0 0
    %322 = vmatpush1.bf16.msra.mxu0 %v296
    %323 = vmatprep.subr.bf16.mxu0 0
    %324 = vmatpush2.bf16.msra.mxu0 0
    %325 = vmatprep.subr.bf16.mxu0 0
    %326 = vmatpush2.bf16.msra.mxu0 0
    %327 = vmatprep.subr.bf16.mxu0 0
    %328 = vmatpush2.bf16.msra.mxu0 0
    %329 = vmatprep.subr.bf16.mxu0 0
    %330 = vmatpush2.bf16.msra.mxu0 0
    %331 = vmatprep.subr.bf16.mxu0 0
    %332 = vmatpush2.bf16.msra.mxu0 0
    %333 = vmatprep.subr.bf16.mxu0 0
    %334 = vmatpush2.bf16.msra.mxu0 0
    %335 = vmatprep.subr.bf16.mxu0 0
    %336 = vmatpush2.bf16.msra.mxu0 0
    %337 = vmatprep.subr.bf16.mxu0 0
    %338 = vmatpush2.bf16.msra.mxu0 0
    %339 = vmatprep.mubr.bf16.mxu0 0
    %340 = vmatmul.mubr.bf16.gmra.mxu0 %v305
    %v341 = vpop.f32.mrf.mxu0
    %v342 = vadd.f32 %v301, %v341
    %v343 = vpop.f32.mrf.mxu0
    %v344 = vpop.f32.mrf.mxu0
    %v345 = vpop.f32.mrf.mxu0
    %346 = vdwg.mxu0
    %347 = vst [vmem:[#allocation2] sm:$0x1] %v342
    // Predicated region
    $region22: #{tpu_custom_call.1} parent=1 // pred_check
      _
    $region23: #{tpu_custom_call.1} parent=1 // pred_check_branch
      %349 = sbr.rel (0) target = $region25
    $region24: #{tpu_custom_call.1} parent=1 // pred_region
      %s351 = ssub.s32 16, 16
      %352 = vsyncadd [#allocation3], %s351
      %s354 = sshll.u32 [#allocation2], 4
      %s355 = int_to_ptr.vmem [resolvable:$true] %s354
      %357 = dma.vmem_to_hbm [thread:$0]  %s355, 16, %s5, [#allocation3]
    $region25: #{tpu_custom_call.1} parent=1 // pred_fallthru
      _
    // Predicated region
    $region26: #{tpu_custom_call.1} parent=1 // pred_check
      _
    $region27: #{tpu_custom_call.1} parent=1 // pred_check_branch
      %359 = sbr.rel (0) target = $region29
    $region28: #{tpu_custom_call.1} parent=1 // pred_region
      %360 = dma.done [#allocation3], 16
    $region29: #{tpu_custom_call.1} parent=1 // pred_fallthru
      _
    %361 = vsyncpa [#allocation3], 1

</llo_original>
